<compile_context>
chip_gen: v6e
topology: v6e:2x2x1
jax: 0.10.0
libtpu: 0.0.40
codegen_flags: <defaults>
</compile_context>

<pallas_src>
import functools

import jax
import jax.numpy as jnp
from jax import lax
from jax.experimental import pallas as pl
from jax.experimental.pallas import tpu as pltpu


def _round_up(x, m):
    return ((x + m - 1) // m) * m


def _softplus(x):
    # stable log(1 + exp(x))
    return jnp.maximum(x, 0.0) + jnp.log(1.0 + jnp.exp(-jnp.abs(x)))


# ----------------------- loss1: masked NLL over nodes ------------------------
def nll_kernel(logp_ref, label_ref, mask_ref, out_ref, acc_ref):
    i = pl.program_id(0)

    @pl.when(i == 0)
    def _():
        acc_ref[0] = jnp.float32(0.0)
        acc_ref[1] = jnp.float32(0.0)

    logp = logp_ref[...]          # (C, TN) log-probabilities, lane-dense in N
    lab = label_ref[...]          # (1, TN) int32 class index (0 for padding)
    m = mask_ref[...]             # (1, TN) 1.0 = train node, 0.0 = other / pad

    cls = lax.broadcasted_iota(jnp.int32, logp.shape, 0)          # (C, TN)
    onehot = (cls == lab).astype(jnp.float32)                     # (C, TN)
    logp_at_y = jnp.sum(onehot * logp, axis=0, keepdims=True)     # (1, TN)

    acc_ref[0] += jnp.sum(m * (-logp_at_y))   # masked NLL numerator
    acc_ref[1] += jnp.sum(m)                  # number of selected (train) nodes

    @pl.when(i == pl.num_programs(0) - 1)
    def _():
        out_ref[0] = acc_ref[0]
        out_ref[1] = acc_ref[1]


# ------------- loss2: BCE-with-logits (pos_weight), lane-dense tiles ---------
def bce_kernel(x_ref, y_ref, pw_ref, out_ref, *, total_count):
    i = pl.program_id(0)
    x = x_ref[...]                # (TR, 128) logits
    y = y_ref[...]                # (TR, 128) targets in [0, 1]
    tr, lanes = x.shape

    # Tail-padding validity computed from the flat element index (no HBM mask).
    row = lax.broadcasted_iota(jnp.int32, (tr, lanes), 0)
    lane = lax.broadcasted_iota(jnp.int32, (tr, lanes), 1)
    flat = (i * tr + row) * lanes + lane
    valid = (flat < total_count).astype(jnp.float32)

    pw = pw_ref[0]
    sp = _softplus(x)
    # pw*y*softplus(-x) + (1-y)*softplus(x) == softplus(x)*(pw*y + 1 - y) - pw*y*x
    loss = sp * (pw * y + (1.0 - y)) - pw * (y * x)
    loss = loss * valid

    # Per-lane partial sums for this tile (lane-dense output, no cross-lane
    # reduce in-kernel); the wrapper does the final tiny reduction.
    out_ref[...] = jnp.sum(loss, axis=0, keepdims=True)   # (1, 128)


# ---------------------------------- wrapper ----------------------------------
def baseline_loss(output1, label1, train_mask, output2, label2, weight,
                  lambda1=1.0, lambda2=1.0):
    N, C = output1.shape

    # ------------------- loss1: NLL over masked (train) nodes ---------------
    tn = max(128, min(2048, _round_up(N, 128)))
    n_pad = _round_up(N, tn)
    logp_t = jnp.pad(jnp.transpose(output1).astype(jnp.float32),
                     ((0, 0), (0, n_pad - N)))                     # (C, n_pad)
    lab2d = jnp.pad(label1.astype(jnp.int32).reshape(1, N),
                    ((0, 0), (0, n_pad - N)))                      # (1, n_pad)
    msk2d = jnp.pad(train_mask.astype(jnp.float32).reshape(1, N),
                    ((0, 0), (0, n_pad - N)))                      # (1, n_pad)
    grid_n = n_pad // tn

    nll_sums = pl.pallas_call(
        nll_kernel,
        out_shape=jax.ShapeDtypeStruct((2,), jnp.float32),
        grid=(grid_n,),
        in_specs=[
            pl.BlockSpec((C, tn), lambda i: (0, i)),
            pl.BlockSpec((1, tn), lambda i: (0, i)),
            pl.BlockSpec((1, tn), lambda i: (0, i)),
        ],
        out_specs=pl.BlockSpec(memory_space=pltpu.MemorySpace.SMEM),
        scratch_shapes=[pltpu.SMEM((2,), jnp.float32)],
        compiler_params=pltpu.CompilerParams(
            dimension_semantics=("arbitrary",),
            vmem_limit_bytes=32 * 1024 * 1024),
    )(logp_t, lab2d, msk2d)
    loss1 = nll_sums[0] / nll_sums[1]

    # ------------------- loss2: BCEWithLogits(pos_weight) -------------------
    m_total = int(output2.size)
    lanes = 128
    r_needed = (m_total + lanes - 1) // lanes
    tr = min(2048, r_needed)                 # ~1 MiB/input tile when large
    r_pad = _round_up(r_needed, tr)
    pad = r_pad * lanes - m_total
    x2 = jnp.pad(output2.reshape(-1).astype(jnp.float32),
                 (0, pad)).reshape(r_pad, lanes)
    y2 = jnp.pad(label2.reshape(-1).astype(jnp.float32),
                 (0, pad)).reshape(r_pad, lanes)
    grid_e = r_pad // tr

    # TODO(synk): only a scalar pos_weight is supported; per-class pos_weight
    # broadcasting along the last dim of output2 is not implemented here.
    pw = jnp.asarray(weight, jnp.float32).reshape(-1)[:1]          # (1,) scalar

    bce_partials = pl.pallas_call(
        functools.partial(bce_kernel, total_count=m_total),
        out_shape=jax.ShapeDtypeStruct((grid_e, lanes), jnp.float32),
        grid=(grid_e,),
        in_specs=[
            pl.BlockSpec((tr, lanes), lambda i: (i, 0)),
            pl.BlockSpec((tr, lanes), lambda i: (i, 0)),
            pl.BlockSpec(memory_space=pltpu.MemorySpace.SMEM),
        ],
        out_specs=pl.BlockSpec((1, lanes), lambda i: (i, 0)),
        compiler_params=pltpu.CompilerParams(
            dimension_semantics=("parallel",),
            vmem_limit_bytes=32 * 1024 * 1024),
    )(x2, y2, pw)
    loss2 = jnp.sum(bce_partials) / m_total

    return lambda1 * loss1 + lambda2 * loss2


# ------------------------------ pure-JAX reference ---------------------------
def baseline_loss_ref(output1, label1, train_mask, output2, label2, weight,
                      lambda1, lambda2):
    mask = train_mask.astype(bool)
    o = output1[mask]
    y = label1[mask]
    loss1 = -jnp.mean(o[jnp.arange(y.shape[0]), y])

    x = output2.reshape(-1).astype(jnp.float32)
    t = label2.reshape(-1).astype(jnp.float32)
    pw = jnp.asarray(weight, jnp.float32).reshape(-1)[0]
    loss2 = jnp.mean(pw * t * jax.nn.softplus(-x) + (1.0 - t) * jax.nn.softplus(x))

    return lambda1 * loss1 + lambda2 * loss2


if __name__ == "__main__":
    key = jax.random.PRNGKey(0)
    N, C = 16, 4
    k1, k2, k3, k4 = jax.random.split(key, 4)

    output1 = jax.nn.log_softmax(jax.random.normal(k1, (N, C), jnp.float32), axis=-1)
    label1 = jax.random.randint(k2, (N,), 0, C, jnp.int32)
    train_mask = jnp.arange(N) < 10                      # 10 train nodes, 6 other
    output2 = jax.random.normal(k3, (N, N), jnp.float32)  # edge logits
    label2 = jax.random.bernoulli(k4, 0.3, (N, N)).astype(jnp.float32)
    weight = jnp.array([2.0], jnp.float32)               # BCE pos_weight
    lambda1, lambda2 = 1.0, 0.5

    loss = jax.jit(baseline_loss)(output1, label1, train_mask, output2, label2,
                                  weight, lambda1, lambda2)
    loss = jax.block_until_ready(loss)

    ref = baseline_loss_ref(output1, label1, train_mask, output2, label2,
                            weight, lambda1, lambda2)
    assert jnp.allclose(loss, ref, atol=1e-4, rtol=1e-4), (loss, ref)

    print("KERNEL_OK")
</pallas_src>

<mosaic_0001>
module attributes {stable_mosaic.version = 11 : i64} {
  func.func @nll_kernel(%arg0: i32, %arg1: memref<4x128xf32, #tpu.memory_space<vmem>>, %arg2: memref<1x128xi32, #tpu.memory_space<vmem>>, %arg3: memref<1x128xf32, #tpu.memory_space<vmem>>, %arg4: memref<2xf32, #tpu.memory_space<smem>>, %arg5: memref<2xf32, #tpu.memory_space<smem>>) attributes {dimension_semantics = [#tpu.dimension_semantics<arbitrary>], iteration_bounds = array<i64: 1>, scalar_prefetch = 0 : i64, scratch_operands = 1 : i64, tpu.core_type = #tpu.core_type<tc>, window_params = [{transform_indices = @transform_0, window_bounds = array<i64: 4, 128>}, {transform_indices = @transform_1, window_bounds = array<i64: 1, 128>}, {transform_indices = @transform_2, window_bounds = array<i64: 1, 128>}, {transform_indices = @transform_3, window_bounds = array<i64: 2>}]} {
    %c0_i32 = arith.constant 0 : i32
    %0 = arith.cmpi eq, %arg0, %c0_i32 : i32
    %1 = arith.extui %0 : i1 to i32
    %c0_i32_0 = arith.constant 0 : i32
    %2 = arith.cmpi ne, %1, %c0_i32_0 : i32
    scf.if %2 {
      %cst_14 = arith.constant 0.000000e+00 : f32
      %c0_15 = arith.constant 0 : index
      %34 = memref.load %arg5[%c0_15] : memref<2xf32, #tpu.memory_space<smem>>
      memref.store %cst_14, %arg5[%c0_15] : memref<2xf32, #tpu.memory_space<smem>>
      %cst_16 = arith.constant 0.000000e+00 : f32
      %c1_17 = arith.constant 1 : index
      %35 = memref.load %arg5[%c1_17] : memref<2xf32, #tpu.memory_space<smem>>
      memref.store %cst_16, %arg5[%c1_17] : memref<2xf32, #tpu.memory_space<smem>>
    } else {
    }
    %c0 = arith.constant 0 : index
    %c0_1 = arith.constant 0 : index
    %3 = vector.load %arg1[%c0, %c0_1] : memref<4x128xf32, #tpu.memory_space<vmem>>, vector<4x128xf32>
    %c0_2 = arith.constant 0 : index
    %c0_3 = arith.constant 0 : index
    %4 = vector.load %arg2[%c0_2, %c0_3] : memref<1x128xi32, #tpu.memory_space<vmem>>, vector<1x128xi32>
    %c0_4 = arith.constant 0 : index
    %c0_5 = arith.constant 0 : index
    %5 = vector.load %arg3[%c0_4, %c0_5] : memref<1x128xf32, #tpu.memory_space<vmem>>, vector<1x128xf32>
    %6 = tpu.iota {dimensions = array<i32: 0>} : vector<4x128xi32>
    %7 = vector.broadcast %4 : vector<1x128xi32> to vector<4x128xi32>
    %8 = arith.cmpi eq, %6, %7 : vector<4x128xi32>
    %9 = arith.extui %8 : vector<4x128xi1> to vector<4x128xi32>
    %10 = arith.sitofp %9 : vector<4x128xi32> to vector<4x128xf32>
    %11 = arith.mulf %10, %3 : vector<4x128xf32>
    %cst = arith.constant dense<0.000000e+00> : vector<128xf32>
    %12 = vector.multi_reduction <add>, %11, %cst [0] : vector<4x128xf32> to vector<128xf32>
    %13 = vector.shape_cast %12 : vector<128xf32> to vector<1x128xf32>
    %c0_6 = arith.constant 0 : index
    %14 = memref.load %arg5[%c0_6] : memref<2xf32, #tpu.memory_space<smem>>
    %cst_7 = arith.constant 0.000000e+00 : f32
    %15 = vector.broadcast %cst_7 : f32 to vector<1x128xf32>
    %16 = arith.subf %15, %13 : vector<1x128xf32>
    %17 = arith.mulf %5, %16 : vector<1x128xf32>
    %18 = vector.shape_cast %17 : vector<1x128xf32> to vector<1x1x128xf32>
    %cst_8 = arith.constant dense<0.000000e+00> : vector<1xf32>
    %19 = vector.multi_reduction <add>, %18, %cst_8 [1, 2] : vector<1x1x128xf32> to vector<1xf32>
    %20 = vector.shape_cast %19 : vector<1xf32> to vector<1x1x1xf32>
    %21 = vector.extract %20[0, 0, 0] : f32 from vector<1x1x1xf32>
    %22 = arith.addf %14, %21 : f32
    %c0_9 = arith.constant 0 : index
    %23 = memref.load %arg5[%c0_9] : memref<2xf32, #tpu.memory_space<smem>>
    memref.store %22, %arg5[%c0_9] : memref<2xf32, #tpu.memory_space<smem>>
    %c1 = arith.constant 1 : index
    %24 = memref.load %arg5[%c1] : memref<2xf32, #tpu.memory_space<smem>>
    %25 = vector.shape_cast %5 : vector<1x128xf32> to vector<1x1x128xf32>
    %cst_10 = arith.constant dense<0.000000e+00> : vector<1xf32>
    %26 = vector.multi_reduction <add>, %25, %cst_10 [1, 2] : vector<1x1x128xf32> to vector<1xf32>
    %27 = vector.shape_cast %26 : vector<1xf32> to vector<1x1x1xf32>
    %28 = vector.extract %27[0, 0, 0] : f32 from vector<1x1x1xf32>
    %29 = arith.addf %24, %28 : f32
    %c1_11 = arith.constant 1 : index
    %30 = memref.load %arg5[%c1_11] : memref<2xf32, #tpu.memory_space<smem>>
    memref.store %29, %arg5[%c1_11] : memref<2xf32, #tpu.memory_space<smem>>
    %c0_i32_12 = arith.constant 0 : i32
    %31 = arith.cmpi eq, %arg0, %c0_i32_12 : i32
    %32 = arith.extui %31 : i1 to i32
    %c0_i32_13 = arith.constant 0 : i32
    %33 = arith.cmpi ne, %32, %c0_i32_13 : i32
    scf.if %33 {
      %c0_14 = arith.constant 0 : index
      %34 = memref.load %arg5[%c0_14] : memref<2xf32, #tpu.memory_space<smem>>
      %c0_15 = arith.constant 0 : index
      %35 = memref.load %arg4[%c0_15] : memref<2xf32, #tpu.memory_space<smem>>
      memref.store %34, %arg4[%c0_15] : memref<2xf32, #tpu.memory_space<smem>>
      %c1_16 = arith.constant 1 : index
      %36 = memref.load %arg5[%c1_16] : memref<2xf32, #tpu.memory_space<smem>>
      %c1_17 = arith.constant 1 : index
      %37 = memref.load %arg4[%c1_17] : memref<2xf32, #tpu.memory_space<smem>>
      memref.store %36, %arg4[%c1_17] : memref<2xf32, #tpu.memory_space<smem>>
    } else {
    }
    return
  }
  func.func @transform_0(%arg0: i32) -> (i32, i32) {
    %c0_i32 = arith.constant 0 : i32
    %c0_i32_0 = arith.constant 0 : i32
    return %c0_i32, %arg0 : i32, i32
  }
  func.func @transform_1(%arg0: i32) -> (i32, i32) {
    %c0_i32 = arith.constant 0 : i32
    %c0_i32_0 = arith.constant 0 : i32
    return %c0_i32, %arg0 : i32, i32
  }
  func.func @transform_2(%arg0: i32) -> (i32, i32) {
    %c0_i32 = arith.constant 0 : i32
    %c0_i32_0 = arith.constant 0 : i32
    return %c0_i32, %arg0 : i32, i32
  }
  func.func @transform_3(%arg0: i32) -> i32 {
    %c0_i32 = arith.constant 0 : i32
    %c0_i32_0 = arith.constant 0 : i32
    return %c0_i32 : i32
  }
}

module attributes {stable_mosaic.version = 11 : i64} {
  func.func @bce_kernel(%arg0: i32, %arg1: memref<2x128xf32, #tpu.memory_space<vmem>>, %arg2: memref<2x128xf32, #tpu.memory_space<vmem>>, %arg3: memref<1xf32, #tpu.memory_space<smem>>, %arg4: memref<1x128xf32, #tpu.memory_space<vmem>>) attributes {dimension_semantics = [#tpu.dimension_semantics<parallel>], iteration_bounds = array<i64: 1>, scalar_prefetch = 0 : i64, scratch_operands = 0 : i64, tpu.core_type = #tpu.core_type<tc>, window_params = [{transform_indices = @transform_0, window_bounds = array<i64: 2, 128>}, {transform_indices = @transform_1, window_bounds = array<i64: 2, 128>}, {transform_indices = @transform_2, window_bounds = array<i64: 1>}, {transform_indices = @transform_3, window_bounds = array<i64: 1, 128>}]} {
    %c0 = arith.constant 0 : index
    %c0_0 = arith.constant 0 : index
    %0 = vector.load %arg1[%c0, %c0_0] : memref<2x128xf32, #tpu.memory_space<vmem>>, vector<2x128xf32>
    %c0_1 = arith.constant 0 : index
    %c0_2 = arith.constant 0 : index
    %1 = vector.load %arg2[%c0_1, %c0_2] : memref<2x128xf32, #tpu.memory_space<vmem>>, vector<2x128xf32>
    %2 = tpu.iota {dimensions = array<i32: 0>} : vector<2x128xi32>
    %3 = tpu.iota {dimensions = array<i32: 1>} : vector<2x128xi32>
    %c2_i32 = arith.constant 2 : i32
    %4 = arith.muli %arg0, %c2_i32 : i32
    %5 = vector.broadcast %4 : i32 to vector<2x128xi32>
    %6 = arith.addi %5, %2 : vector<2x128xi32>
    %c128_i32 = arith.constant 128 : i32
    %7 = vector.broadcast %c128_i32 : i32 to vector<2x128xi32>
    %8 = arith.muli %6, %7 : vector<2x128xi32>
    %9 = arith.addi %8, %3 : vector<2x128xi32>
    %c256_i32 = arith.constant 256 : i32
    %10 = vector.broadcast %c256_i32 : i32 to vector<2x128xi32>
    %11 = arith.cmpi slt, %9, %10 : vector<2x128xi32>
    %12 = arith.extui %11 : vector<2x128xi1> to vector<2x128xi32>
    %13 = arith.sitofp %12 : vector<2x128xi32> to vector<2x128xf32>
    %c0_3 = arith.constant 0 : index
    %14 = memref.load %arg3[%c0_3] : memref<1xf32, #tpu.memory_space<smem>>
    %cst = arith.constant 0.000000e+00 : f32
    %15 = vector.broadcast %cst : f32 to vector<2x128xf32>
    %16 = arith.maximumf %0, %15 : vector<2x128xf32>
    %17 = math.absf %0 : vector<2x128xf32>
    %cst_4 = arith.constant 0.000000e+00 : f32
    %18 = vector.broadcast %cst_4 : f32 to vector<2x128xf32>
    %19 = arith.subf %18, %17 : vector<2x128xf32>
    %20 = math.exp %19 : vector<2x128xf32>
    %cst_5 = arith.constant 1.000000e+00 : f32
    %21 = vector.broadcast %cst_5 : f32 to vector<2x128xf32>
    %22 = arith.addf %21, %20 : vector<2x128xf32>
    %23 = math.log %22 : vector<2x128xf32>
    %24 = arith.addf %16, %23 : vector<2x128xf32>
    %25 = vector.broadcast %14 : f32 to vector<2x128xf32>
    %26 = arith.mulf %25, %1 : vector<2x128xf32>
    %cst_6 = arith.constant 1.000000e+00 : f32
    %27 = vector.broadcast %cst_6 : f32 to vector<2x128xf32>
    %28 = arith.subf %27, %1 : vector<2x128xf32>
    %29 = arith.addf %26, %28 : vector<2x128xf32>
    %30 = arith.mulf %24, %29 : vector<2x128xf32>
    %31 = arith.mulf %1, %0 : vector<2x128xf32>
    %32 = vector.broadcast %14 : f32 to vector<2x128xf32>
    %33 = arith.mulf %32, %31 : vector<2x128xf32>
    %34 = arith.subf %30, %33 : vector<2x128xf32>
    %35 = arith.mulf %34, %13 : vector<2x128xf32>
    %cst_7 = arith.constant dense<0.000000e+00> : vector<128xf32>
    %36 = vector.multi_reduction <add>, %35, %cst_7 [0] : vector<2x128xf32> to vector<128xf32>
    %37 = vector.shape_cast %36 : vector<128xf32> to vector<1x128xf32>
    %c0_8 = arith.constant 0 : index
    %c0_9 = arith.constant 0 : index
    %38 = vector.load %arg4[%c0_8, %c0_9] : memref<1x128xf32, #tpu.memory_space<vmem>>, vector<1x128xf32>
    tpu.vector_store %arg4[%c0_8, %c0_9], %37 {strides = array<i32>} : memref<1x128xf32, #tpu.memory_space<vmem>>, vector<1x128xf32>,
    return
  }
  func.func @transform_0(%arg0: i32) -> (i32, i32) {
    %c0_i32 = arith.constant 0 : i32
    %c0_i32_0 = arith.constant 0 : i32
    return %arg0, %c0_i32 : i32, i32
  }
  func.func @transform_1(%arg0: i32) -> (i32, i32) {
    %c0_i32 = arith.constant 0 : i32
    %c0_i32_0 = arith.constant 0 : i32
    return %arg0, %c0_i32 : i32, i32
  }
  func.func @transform_2(%arg0: i32) -> i32 {
    %c0_i32 = arith.constant 0 : i32
    %c0_i32_0 = arith.constant 0 : i32
    return %c0_i32 : i32
  }
  func.func @transform_3(%arg0: i32) -> (i32, i32) {
    %c0_i32 = arith.constant 0 : i32
    %c0_i32_0 = arith.constant 0 : i32
    return %arg0, %c0_i32 : i32, i32
  }
}

</mosaic_0001>

<llo_original>
// kernel: baseline_loss.3
$region0: #{baseline_loss.3}
  #allocation0 [shape = 'u32[]', space=smem, size = 0x4, offset = 0x4, fixed_abs, tag = 'smem constant byte address 0x4 - core index']
  #allocation1 [shape = 'u32[144,128]{1,0:T(1,128)}', space=vmem, size = 0x12000, scoped, tag = 'internal scratch']
  #allocation2 [shape = 'f32[1]{0:T(128)S(6)}', space=smem, size = 0x200, scoped, tag = 'scoped memory for baseline_loss.3']
  %s0 = inlined_call_operand.vmem [shape: f32[2,128], index: 0, kind: input, shape index: {}]
  %s1 = inlined_call_operand.vmem [shape: f32[2,128], index: 1, kind: input, shape index: {}]
  %s2 = inlined_call_operand.<no memory space> [shape: f32[1], index: 2, kind: input, shape index: {}]
  %s3 = inlined_call_operand.vmem [shape: f32[1,128], index: 3, kind: output, shape index: {}]
  %s4 = sld [smem:[#allocation0]]
  $region22: #{baseline_loss.3} parent=0
    _
  %s6 = ssub.s32 1, %s4
  %s7 = scalar_select 0, %s6, %s4
  %8 = sst [smem:[#allocation2]] %s2
  // Predicated region
  $region2: #{baseline_loss.3} parent=0 // pred_check
    _
  $region3: #{baseline_loss.3} parent=0 // pred_check_branch
    %10 = sbr.rel (0) target = $region5
  $region4: #{baseline_loss.3} parent=0 // pred_region
    _
  $region5: #{baseline_loss.3} parent=0 // pred_fallthru
    _
  // Predicated region
  $region6: #{baseline_loss.3} parent=0 // pred_check
    _
  $region7: #{baseline_loss.3} parent=0 // pred_check_branch
    %12 = sbr.rel (0) target = $region9
  $region8: #{baseline_loss.3} parent=0 // pred_region
    _
  $region9: #{baseline_loss.3} parent=0 // pred_fallthru
    _
  // Predicated region
  $region10: #{baseline_loss.3} parent=0 // pred_check
    _
  $region11: #{baseline_loss.3} parent=0 // pred_check_branch
    %14 = sbr.rel (0) target = $region13
  $region12: #{baseline_loss.3} parent=0 // pred_region
    _
  $region13: #{baseline_loss.3} parent=0 // pred_fallthru
    _
  %v15 = vld [vmem:[%s0] sm:$0x3]
  %v16 = vld [vmem:[%s1] sm:$0x3]
  %v17 = vlaneseq
  %v18 = vshrl.u32 %v17, 7
  %v19 = vlaneseq
  %v20 = vand.u32 %v19, 127
  %s21 = smul.u32 0, 2
  %v22 = vstv %s21
  %v23 = vadd.s32 %v22, %v18
  %v24 = vmul.u32 %v23, 128
  %v25 = vadd.s32 %v24, %v20
  %vm26 = vcmp.lt.s32.totalorder %v25, 256
  %v27 = vsel %vm26, 1, 0
  %v28 = vcvt.s32.f32 %v27
  %s29 = sld [smem:[#allocation2]]
  %v30 = vmax.f32 %v15, 0.0
  %v31 = vand.u32 2147483647, %v15
  %v32 = vsub.f32 0.0, %v31
  %v33 = vmul.f32 %v32, 1.442695
  %v34 = vpow.pop %v33
  %v35 = vadd.f32 %v34, 1.0
  %v36 = vlog2.pop %v35
  %v37 = vmul.f32 %v36, 0.6931472
  %v38 = vadd.f32 %v30, %v37
  %v39 = vstv %s29
  %v40 = vmul.f32 %v39, %v16
  %v41 = vsub.f32 1.0, %v16
  %v42 = vadd.f32 %v40, %v41
  %v43 = vmul.f32 %v38, %v42
  %v44 = vmul.f32 %v16, %v15
  %v45 = vmul.f32 %v39, %v44
  %v46 = vsub.f32 %v43, %v45
  %v47 = vmul.f32 %v46, %v28
  %vm48 = vcmask 1041408
  %v49 = vsel %vm48, %v47, 0.0
  %v50 = vrot.slane %v49, 4
  %v51 = vadd.f32 %v49, %v50
  %v52 = vrot.slane %v51, 2
  %v53 = vadd.f32 %v51, %v52
  %v54 = vrot.slane %v53, 1
  %v55 = vadd.f32 %v53, %v54
  %56 = vst [vmem:[%s3] sm:$0x1] %v55
  // Predicated region
  $region14: #{baseline_loss.3} parent=0 // pred_check
    _
  $region15: #{baseline_loss.3} parent=0 // pred_check_branch
    %58 = sbr.rel (0) target = $region17
  $region16: #{baseline_loss.3} parent=0 // pred_region
    _
  $region17: #{baseline_loss.3} parent=0 // pred_fallthru
    _
  // Predicated region
  $region18: #{baseline_loss.3} parent=0 // pred_check
    _
  $region19: #{baseline_loss.3} parent=0 // pred_check_branch
    %60 = sbr.rel (0) target = $region21
  $region20: #{baseline_loss.3} parent=0 // pred_region
    _
  $region21: #{baseline_loss.3} parent=0 // pred_fallthru
    _

// kernel: baseline_loss.2
$region0: #{baseline_loss.2}
  #allocation0 [shape = 'u32[]', space=smem, size = 0x4, offset = 0x4, fixed_abs, tag = 'smem constant byte address 0x4 - core index']
  #allocation1 [shape = 'u32[144,128]{1,0:T(1,128)}', space=vmem, size = 0x12000, scoped, tag = 'internal scratch']
  #allocation2 [shape = 'f32[2]{0:T(128)}', space=smem, size = 0x200, scoped, tag = 'scratch operand']
  %s0 = inlined_call_operand.vmem [shape: f32[4,128], index: 0, kind: input, shape index: {}]
  %s1 = inlined_call_operand.vmem [shape: s32[1,128], index: 1, kind: input, shape index: {}]
  %s2 = inlined_call_operand.vmem [shape: f32[1,128], index: 2, kind: input, shape index: {}]
  %s3 = inlined_call_operand.vmem [shape: f32[2], index: 3, kind: output, shape index: {}]
  %s4 = sld [smem:[#allocation0]]
  $region30: #{baseline_loss.2} parent=0
    _
  %s6 = ssub.s32 1, %s4
  %s7 = scalar_select 0, %s6, %s4
  $region1: #{baseline_loss.2} parent=0
    #allocation3 [shape = 'u8[512]{0}', space=smem, size = 0x200, scoped, tag = 'output window, operand 0, single buffered']
    #allocation4 [shape = 's32[1]{0}', space=sflag, size = 0x4, scoped, tag = 'scoped memory for baseline_loss.2']
    %8 = vsyncpa [#allocation4], 0
    // Predicated region
    $region2: #{baseline_loss.2} parent=1 // pred_check
      _
    $region3: #{baseline_loss.2} parent=1 // pred_check_branch
      %10 = sbr.rel (0) target = $region5
    $region4: #{baseline_loss.2} parent=1 // pred_region
      _
    $region5: #{baseline_loss.2} parent=1 // pred_fallthru
      _
    // Predicated region
    $region6: #{baseline_loss.2} parent=1 // pred_check
      _
    $region7: #{baseline_loss.2} parent=1 // pred_check_branch
      %12 = sbr.rel (0) target = $region9
    $region8: #{baseline_loss.2} parent=1 // pred_region
      _
    $region9: #{baseline_loss.2} parent=1 // pred_fallthru
      _
    // Predicated region
    $region10: #{baseline_loss.2} parent=1 // pred_check
      _
    $region11: #{baseline_loss.2} parent=1 // pred_check_branch
      %14 = sbr.rel (0) target = $region13
    $region12: #{baseline_loss.2} parent=1 // pred_region
      _
    $region13: #{baseline_loss.2} parent=1 // pred_fallthru
      _
    %p15 = scmp.eq.s32.totalorder 0, 0
    // Predicated region
    $region14: #{baseline_loss.2} parent=1 // pred_check
      %p16 = pneg %p15
    $region15: #{baseline_loss.2} parent=1 // pred_check_branch
      %18 = sbr.rel (%p16) target = $region17
    $region16: #{baseline_loss.2} parent=1 // pred_region
      %s19 = scalar_lea.smem [#allocation2], 0
      %20 = sst [smem:[%s19]] 0.0
      %s21 = scalar_lea.smem [#allocation2], 1
      %22 = sst [smem:[%s21]] 0.0
    $region17: #{baseline_loss.2} parent=1 // pred_fallthru
      _
    %v23 = vld [vmem:[%s0] sm:$0xf]
    %v24 = vld [vmem:[%s1] sm:$0x1]
    %v25 = vld [vmem:[%s2] sm:$0x1]
    %v26 = vlaneseq
    %v27 = vshrl.u32 %v26, 7
    %v28 = vlaneseq
    %v29 = vshrl.u32 %v28, 7
    %v30 = vsub.s32 0, %v29
    %v31 = vrot.slane %v24, %v30
    %vm32 = vcmp.eq.s32.totalorder %v27, %v31
    %v33 = vsel %vm32, 1, 0
    %v34 = vcvt.s32.f32 %v33
    %v35 = vmul.f32 %v34, %v23
    %vm36 = vcmask 1043456
    %v37 = vsel %vm36, %v35, 0.0
    %v38 = vrot.slane %v37, 4
    %v39 = vadd.f32 %v37, %v38
    %v40 = vrot.slane %v39, 2
    %v41 = vadd.f32 %v39, %v40
    %v42 = vrot.slane %v41, 1
    %v43 = vadd.f32 %v41, %v42
    %s44 = sld [smem:[#allocation2]]
    %v45 = vsub.f32 0.0, %v43
    %v46 = vmul.f32 %v25, %v45
    %vm47 = vcmask 1040384
    %v48 = vsel %vm47, %v46, 0.0
    %49 = vadd.xlane.f32.xlu0 %v48
    %v50 = vpop.xlane.xlu0 %49
    %v51 = vrot.slane %v50, 4
    %v52 = vadd.f32 %v50, %v51
    %v53 = vrot.slane %v52, 2
    %v54 = vadd.f32 %v52, %v53
    %v55 = vrot.slane %v54, 1
    %v56 = vadd.f32 %v54, %v55
    %s57 = vtos %v56
    %s58 = sadd.f32 %s44, %s57
    %s59 = scalar_lea.smem [#allocation2], 0
    %60 = sst [smem:[%s59]] %s58
    %s61 = sld [smem:[#allocation2 + $0x1]]
    %v62 = vsel %vm47, %v25, 0.0
    %63 = vadd.xlane.f32.xlu0 %v62
    %v64 = vpop.xlane.xlu0 %63
    %v65 = vrot.slane %v64, 4
    %v66 = vadd.f32 %v64, %v65
    %v67 = vrot.slane %v66, 2
    %v68 = vadd.f32 %v66, %v67
    %v69 = vrot.slane %v68, 1
    %v70 = vadd.f32 %v68, %v69
    %s71 = vtos %v70
    %s72 = sadd.f32 %s61, %s71
    %s73 = scalar_lea.smem [#allocation2], 1
    %74 = sst [smem:[%s73]] %s72
    // Predicated region
    $region18: #{baseline_loss.2} parent=1 // pred_check
      %p75 = pneg %p15
    $region19: #{baseline_loss.2} parent=1 // pred_check_branch
      %77 = sbr.rel (%p75) target = $region21
    $region20: #{baseline_loss.2} parent=1 // pred_region
      %s78 = sld [smem:[#allocation2]]
      %s79 = scalar_lea.smem [#allocation3], 0
      %80 = sst [smem:[%s79]] %s78
      %s81 = sld [smem:[#allocation2 + $0x1]]
      %s82 = scalar_lea.smem [#allocation3], 1
      %83 = sst [smem:[%s82]] %s81
    $region21: #{baseline_loss.2} parent=1 // pred_fallthru
      _
    // Predicated region
    $region22: #{baseline_loss.2} parent=1 // pred_check
      _
    $region23: #{baseline_loss.2} parent=1 // pred_check_branch
      %85 = sbr.rel (0) target = $region25
    $region24: #{baseline_loss.2} parent=1 // pred_region
      %s87 = ssub.s32 16, 16
      %88 = vsyncadd [#allocation4], %s87
      %s90 = sshll.u32 %s3, 4
      %s91 = int_to_ptr.vmem [resolvable:$true] %s90
      %93 = dma.smem_to_vmem [#allocation3], 16, %s91, [#allocation4]
    $region25: #{baseline_loss.2} parent=1 // pred_fallthru
      _
    // Predicated region
    $region26: #{baseline_loss.2} parent=1 // pred_check
      _
    $region27: #{baseline_loss.2} parent=1 // pred_check_branch
      %95 = sbr.rel (0) target = $region29
    $region28: #{baseline_loss.2} parent=1 // pred_region
      %96 = dma.done [#allocation4], 16
    $region29: #{baseline_loss.2} parent=1 // pred_fallthru
      _
    %97 = sfence
    %98 = vsyncpa [#allocation4], 1

</llo_original>
